<compile_context>
chip_gen: v5e
topology: v5e:2x2
jax: 0.10.0
libtpu: 0.0.40
codegen_flags: <defaults>
</compile_context>

<pallas_src>
import math

import jax
import jax.numpy as jnp
from jax.experimental import pallas as pl
from jax.experimental.pallas import tpu as pltpu


# ------------------------------ kernels ------------------------------------


def _detrend_norm_kernel(x_ref, mean_ref, o_ref):
    # x_ref: (TILE_R, L)  mean_ref: (1, L) -> broadcast over rows.
    o_ref[...] = x_ref[...].astype(o_ref.dtype) - mean_ref[...]


def _detrend_denorm_kernel(x_ref, mean_ref, o_ref):
    o_ref[...] = x_ref[...].astype(o_ref.dtype) + mean_ref[...]


# ------------------------------ helpers -------------------------------------


_FAST_PATH_MAX_BYTES = 1 << 20  # below this, plain jnp beats kernel launch.


def _sublane_multiple(dtype) -> int:
    """Rows per packed sublane group: 8 (f32), 16 (bf16/f16), 32 (int8/fp8)."""
    return max(8, 32 // jnp.dtype(dtype).itemsize)


def _physical_vmem_bytes() -> int:
    """Per-core VMEM capacity; conservative 64 MiB (v7x) if unqueryable."""
    try:
        info = pltpu.get_tpu_info()
        cap = int(getattr(info, "vmem_capacity_bytes", 0) or 0)
        if cap > 0:
            return cap
    except Exception:
        pass
    return 64 * 1024 * 1024


def _choose_reps(rows: int, F: int, target_lanes: int = 2048,
                 max_lanes: int = 8192):
    """Pick reps (rows fused per lane-row) so L = reps*F is a multiple of 128.

    Returns (reps_or_None, base).  `base` is the minimal reps giving lane
    density; reps is the best multiple of `base` that also divides `rows`
    (None if even `base` does not divide `rows` -> caller pads the rows).
    """
    base = 128 // math.gcd(F, 128)
    if rows % base != 0:
        return None, base
    best = base
    k = 2
    while True:
        reps = base * k
        L = reps * F
        if L > max_lanes or reps > rows:
            break
        if rows % reps == 0:
            best = reps
            if L >= target_lanes:
                break
        k += 1
    return best, base


# ------------------------------ wrapper -------------------------------------


def detrender_forward(x: jax.Array, mean: jax.Array, mode: str, *,
                      donate_x: bool = False,
                      force_pallas: bool = False) -> jax.Array:
    """Pallas implementation of Detrender.forward.

    x:    (B, T, F)
    mean: (1, 1, F)  (the nn.Parameter `self.mean`)
    mode: 'norm' | 'denorm'
    """
    if mode == "norm":
        kernel = _detrend_norm_kernel
    elif mode == "denorm":
        kernel = _detrend_denorm_kernel
    else:
        raise NotImplementedError(mode)

    B, T, F = x.shape
    assert mean.shape == (1, 1, F), mean.shape

    # Match PyTorch promotion: (x - mean) computes / returns in result_type.
    compute_dtype = jnp.result_type(x.dtype, mean.dtype)
    mean = mean.astype(compute_dtype)
    in_itemsize = jnp.dtype(x.dtype).itemsize
    out_itemsize = jnp.dtype(compute_dtype).itemsize

    # ---- tiny-input fast path: launch/DMA setup would dominate -------------
    if (not force_pallas
            and x.size * max(in_itemsize, out_itemsize) < _FAST_PATH_MAX_BYTES):
        xm = x.astype(compute_dtype)
        return xm - mean if mode == "norm" else xm + mean

    # ---- lane-dense flat view (L always a multiple of 128) ------------------
    rows = B * T
    reps, base = _choose_reps(rows, F)
    if reps is None:
        # Pad row count so the fused lane-row is dense.  Costs one extra copy
        # of x, still cheaper than masked (<128-lane) stores on every row.
        reps = base
        rows_pad = pl.cdiv(rows, reps) * reps
        x2 = jnp.concatenate(
            [x.reshape(rows, F),
             jnp.zeros((rows_pad - rows, F), dtype=x.dtype)], axis=0)
    else:
        rows_pad = rows
        x2 = x.reshape(rows, F)

    L = reps * F
    R = rows_pad // reps
    x2 = x2.reshape(R, L)                                   # free reshape
    mean_row = jnp.tile(mean.reshape(1, F), (1, reps))      # (1, L), resident

    # ---- generation-aware row tiling ----------------------------------------
    sub = _sublane_multiple(x.dtype)
    phys_vmem = _physical_vmem_bytes()
    # Budget ~ 2 input bufs + 2 output bufs + mean + slack must fit VMEM.
    usable = max(16 << 20, min(phys_vmem - (8 << 20), 112 << 20))
    target_block_bytes = min(12 << 20, usable // 5)

    bytes_per_row = L * max(in_itemsize, out_itemsize)
    max_rows_per_block = max(1, target_block_bytes // bytes_per_row)

    if R <= sub:
        tile_r = R
    else:
        tile_r = min(R, max(sub, (max_rows_per_block // sub) * sub))
        # Keep >= 4 grid steps (when rows allow) so a 2-TC chip (v7x) can
        # shard the "parallel" axis across both TensorCores.
        desired_steps = min(4, pl.cdiv(R, sub))
        step_cap = max(sub, ((R // desired_steps) // sub) * sub)
        tile_r = min(tile_r, step_cap)
    grid_r = pl.cdiv(R, tile_r)

    vmem_limit = (2 * tile_r * L * in_itemsize      # double-buffered input
                  + 2 * tile_r * L * out_itemsize   # double-buffered output
                  + 2 * L * out_itemsize            # resident mean row
                  + (4 << 20))                      # compiler scratch headroom
    vmem_limit = int(min(max(vmem_limit, 32 << 20), phys_vmem - (4 << 20)))

    # Aliasing is a footprint/allocator win (not a bandwidth win): only valid
    # when the flattened input matches the output buffer exactly.
    io_aliases = {}
    if donate_x and rows_pad == rows and x.dtype == compute_dtype:
        io_aliases = {0: 0}

    out2 = pl.pallas_call(
        kernel,
        out_shape=jax.ShapeDtypeStruct((R, L), compute_dtype),
        grid_spec=pltpu.PrefetchScalarGridSpec(
            num_scalar_prefetch=0,
            grid=(grid_r,),
            in_specs=[
                pl.BlockSpec((tile_r, L), lambda r: (r, 0)),
                # mean stays resident: constant block index across the grid.
                pl.BlockSpec((1, L), lambda r: (0, 0)),
            ],
            out_specs=pl.BlockSpec((tile_r, L), lambda r: (r, 0)),
        ),
        compiler_params=pltpu.CompilerParams(
            # Row blocks are independent -> shard across TCs on v7x.
            # TODO(synk): if profiling shows one idle TC on v7x, switch to
            # pltpu.CORE_PARALLEL / pl.core_map over a 2-core mesh.
            dimension_semantics=("parallel",),
            vmem_limit_bytes=vmem_limit,
        ),
        input_output_aliases=io_aliases,
    )(x2, mean_row)

    out = out2.reshape(rows_pad, F)
    if rows_pad != rows:
        out = out[:rows]
    return out.reshape(B, T, F)


class DetrenderPallas:
    """Mirror of the PyTorch Detrender module (forward semantics only)."""

    def __init__(self, num_features: int, gamma: float = 0.99):
        self.num_features = num_features
        self.gamma = gamma
        # nn.Parameter(torch.zeros(1, 1, num_features)) — deterministic init.
        self.mean = jnp.zeros((1, 1, num_features), dtype=jnp.float32)

    def __call__(self, x: jax.Array, mode: str, **kwargs) -> jax.Array:
        return detrender_forward(x, self.mean, mode, **kwargs)

    # _update_statistics / _set_statistics are training-time buffer updates,
    # not part of the forward hot path; kept as plain JAX glue.
    def _update_statistics(self, x: jax.Array):
        mu = jnp.mean(x, axis=tuple(range(x.ndim - 1)), keepdims=True)
        self.mean = self.mean + (1.0 - self.gamma) * (mu - self.mean)

    def _set_statistics(self, x: jax.Array):
        self.mean = x


if __name__ == "__main__":
    key = jax.random.PRNGKey(0)
    kx, km, kx2, km2 = jax.random.split(key, 4)

    # --- Case 1: divisor-friendly shape (lane-dense fusion, no padding) -----
    B, T, F = 2, 8, 32
    x = jax.random.normal(kx, (B, T, F), dtype=jnp.float32)
    model = DetrenderPallas(num_features=F)
    model._set_statistics(jax.random.normal(km, (1, 1, F), dtype=jnp.float32))

    y_norm = jax.block_until_ready(model(x, "norm", force_pallas=True))
    y_denorm = jax.block_until_ready(model(x, "denorm", force_pallas=True))
    ref_norm = x - model.mean
    ref_denorm = x + model.mean
    assert y_norm.shape == x.shape and y_norm.dtype == x.dtype
    assert jnp.allclose(y_norm, ref_norm, atol=1e-6)
    assert jnp.allclose(y_denorm, ref_denorm, atol=1e-6)
    # Round trip: denorm(norm(x)) == x
    assert jnp.allclose(model(y_norm, "denorm", force_pallas=True), x, atol=1e-6)
    # Auto (small-input fast) path agrees with the kernel path.
    assert jnp.allclose(model(x, "norm"), ref_norm, atol=1e-6)

    # --- Case 2: awkward shape -> pad-to-lane-dense path ---------------------
    B2, T2, F2 = 3, 5, 7
    x_odd = jax.random.normal(kx2, (B2, T2, F2), dtype=jnp.float32)
    model2 = DetrenderPallas(num_features=F2)
    model2._set_statistics(jax.random.normal(km2, (1, 1, F2), dtype=jnp.float32))
    y_odd = jax.block_until_ready(model2(x_odd, "norm", force_pallas=True))
    assert y_odd.shape == x_odd.shape
    assert jnp.allclose(y_odd, x_odd - model2.mean, atol=1e-6)

    # --- Case 3: bf16 input, f32 mean -> promoted (f32) output like PyTorch -
    x_bf16 = x.astype(jnp.bfloat16)
    y_bf16 = jax.block_until_ready(model(x_bf16, "norm", force_pallas=True))
    assert y_bf16.dtype == jnp.float32
    assert jnp.allclose(y_bf16, x_bf16.astype(jnp.float32) - model.mean,
                        atol=1e-6)

    print("KERNEL_OK")
</pallas_src>

<mosaic_0001>
module attributes {stable_mosaic.version = 11 : i64} {
  func.func @_detrend_norm_kernel(%arg0: i32, %arg1: memref<1x512xf32, #tpu.memory_space<vmem>>, %arg2: memref<1x512xf32, #tpu.memory_space<vmem>>, %arg3: memref<1x512xf32, #tpu.memory_space<vmem>>) attributes {dimension_semantics = [#tpu.dimension_semantics<parallel>], iteration_bounds = array<i64: 1>, scalar_prefetch = 0 : i64, scratch_operands = 0 : i64, tpu.core_type = #tpu.core_type<tc>, window_params = [{transform_indices = @transform_0, window_bounds = array<i64: 1, 512>}, {pipeline_mode = #tpu.pipeline_mode<synchronous>, transform_indices = @transform_1, window_bounds = array<i64: 1, 512>}, {transform_indices = @transform_2, window_bounds = array<i64: 1, 512>}]} {
    %c0 = arith.constant 0 : index
    %c0_0 = arith.constant 0 : index
    %0 = vector.load %arg1[%c0, %c0_0] : memref<1x512xf32, #tpu.memory_space<vmem>>, vector<1x512xf32>
    %c0_1 = arith.constant 0 : index
    %c0_2 = arith.constant 0 : index
    %1 = vector.load %arg2[%c0_1, %c0_2] : memref<1x512xf32, #tpu.memory_space<vmem>>, vector<1x512xf32>
    %2 = arith.subf %0, %1 : vector<1x512xf32>
    %c0_3 = arith.constant 0 : index
    %c0_4 = arith.constant 0 : index
    %3 = vector.load %arg3[%c0_3, %c0_4] : memref<1x512xf32, #tpu.memory_space<vmem>>, vector<1x512xf32>
    tpu.vector_store %arg3[%c0_3, %c0_4], %2 {strides = array<i32>} : memref<1x512xf32, #tpu.memory_space<vmem>>, vector<1x512xf32>,
    return
  }
  func.func @transform_0(%arg0: i32) -> (i32, i32) {
    %c0_i32 = arith.constant 0 : i32
    %c0_i32_0 = arith.constant 0 : i32
    return %arg0, %c0_i32 : i32, i32
  }
  func.func @transform_1(%arg0: i32) -> (i32, i32) {
    %c0_i32 = arith.constant 0 : i32
    %c0_i32_0 = arith.constant 0 : i32
    %c0_i32_1 = arith.constant 0 : i32
    return %c0_i32, %c0_i32_0 : i32, i32
  }
  func.func @transform_2(%arg0: i32) -> (i32, i32) {
    %c0_i32 = arith.constant 0 : i32
    %c0_i32_0 = arith.constant 0 : i32
    return %arg0, %c0_i32 : i32, i32
  }
}

</mosaic_0001>

<llo_original>
// kernel: tpu_custom_call.1
$region0: #{tpu_custom_call.1}
  #allocation0 [shape = 'u32[]', space=smem, size = 0x4, offset = 0x4, fixed_abs, tag = 'smem constant byte address 0x4 - core index']
  #allocation1 [shape = 'u32[72,128]{1,0:T(1,128)}', space=vmem, size = 0x9000, scoped, tag = 'internal scratch']
  %s0 = inlined_call_operand.hbm [shape: f32[1,512], index: 0, kind: input, shape index: {}]
  %s1 = inlined_call_operand.hbm [shape: f32[1,512], index: 1, kind: input, shape index: {}]
  %s2 = inlined_call_operand.hbm [shape: f32[1,512], index: 2, kind: output, shape index: {}]
  %s3 = sld [smem:[#allocation0]]
  $region26: #{tpu_custom_call.1} parent=0
    _
  %s5 = ssub.s32 1, %s3
  %s6 = scalar_select 0, %s5, %s3
  $region1: #{tpu_custom_call.1} parent=0
    #allocation2 [shape = 'u8[2048]{0}', space=vmem, size = 0x800, scoped, tag = 'input window, operand 0, single buffered']
    #allocation3 [shape = 's32[1]{0}', space=sflag, size = 0x4, scoped, tag = 'scoped memory for tpu_custom_call.1']
    #allocation4 [shape = 's32[1]{0}', space=sflag, size = 0x4, scoped, tag = 'scoped memory for tpu_custom_call.1']
    #allocation5 [shape = 'u8[2048]{0}', space=vmem, size = 0x800, scoped, tag = 'input window, operand 1, single buffered']
    #allocation6 [shape = 's32[1]{0}', space=sflag, size = 0x4, scoped, tag = 'scoped memory for tpu_custom_call.1']
    #allocation7 [shape = 'u8[2048]{0}', space=vmem, size = 0x800, scoped, tag = 'output window, operand 0, single buffered']
    %7 = vsyncpa [#allocation3], 0
    %8 = vsyncpa [#allocation6], 0
    %9 = vsyncpa [#allocation4], 0
    // Predicated region
    $region2: #{tpu_custom_call.1} parent=1 // pred_check
      _
    $region3: #{tpu_custom_call.1} parent=1 // pred_check_branch
      %11 = sbr.rel (0) target = $region5
    $region4: #{tpu_custom_call.1} parent=1 // pred_region
      %13 = vsyncadd [#allocation3], 0
      %s15 = sshll.u32 %s0, 4
      %s16 = int_to_ptr.hbm [resolvable:$true] %s15
      %s17 = sshll.u32 [#allocation2], 4
      %s18 = int_to_ptr.vmem [resolvable:$true] %s17
      %20 = dma.hbm_to_vmem [thread:$0]  %s16, 64, %s18, [#allocation3]
    $region5: #{tpu_custom_call.1} parent=1 // pred_fallthru
      _
    // Predicated region
    $region6: #{tpu_custom_call.1} parent=1 // pred_check
      _
    $region7: #{tpu_custom_call.1} parent=1 // pred_check_branch
      %22 = sbr.rel (0) target = $region9
    $region8: #{tpu_custom_call.1} parent=1 // pred_region
      %24 = vsyncadd [#allocation6], 0
      %s26 = sshll.u32 %s1, 4
      %s27 = int_to_ptr.hbm [resolvable:$true] %s26
      %s28 = sshll.u32 [#allocation5], 4
      %s29 = int_to_ptr.vmem [resolvable:$true] %s28
      %31 = dma.hbm_to_vmem [thread:$0]  %s27, 64, %s29, [#allocation6]
    $region9: #{tpu_custom_call.1} parent=1 // pred_fallthru
      _
    // Predicated region
    $region10: #{tpu_custom_call.1} parent=1 // pred_check
      _
    $region11: #{tpu_custom_call.1} parent=1 // pred_check_branch
      %33 = sbr.rel (0) target = $region13
    $region12: #{tpu_custom_call.1} parent=1 // pred_region
      %35 = dma.done [#allocation3], 64
    $region13: #{tpu_custom_call.1} parent=1 // pred_fallthru
      _
    // Predicated region
    $region14: #{tpu_custom_call.1} parent=1 // pred_check
      _
    $region15: #{tpu_custom_call.1} parent=1 // pred_check_branch
      %37 = sbr.rel (0) target = $region17
    $region16: #{tpu_custom_call.1} parent=1 // pred_region
      %39 = dma.done [#allocation6], 64
    $region17: #{tpu_custom_call.1} parent=1 // pred_fallthru
      _
    %v40 = vld [vmem:[#allocation2] sm:$0xf]
    %v41 = vld [vmem:[#allocation5] sm:$0xf]
    %v42 = vsub.f32 %v40, %v41
    %v43 = vlaneseq
    %vm44 = vcmp.ge.s32.totalorder %v43, 0
    %vm45 = vcmp.lt.s32.totalorder %v43, 512
    %vm46 = vmand %vm44, %vm45
    %47 = vst.msk [vmem:[#allocation7] sm:$0xf] %vm46, %v42
    // Predicated region
    $region18: #{tpu_custom_call.1} parent=1 // pred_check
      _
    $region19: #{tpu_custom_call.1} parent=1 // pred_check_branch
      %49 = sbr.rel (0) target = $region21
    $region20: #{tpu_custom_call.1} parent=1 // pred_region
      %51 = vsyncadd [#allocation4], 0
      %s53 = sshll.u32 [#allocation7], 4
      %s54 = int_to_ptr.vmem [resolvable:$true] %s53
      %s55 = sshll.u32 %s2, 4
      %s56 = int_to_ptr.hbm [resolvable:$true] %s55
      %58 = dma.vmem_to_hbm [thread:$0]  %s54, 64, %s56, [#allocation4]
    $region21: #{tpu_custom_call.1} parent=1 // pred_fallthru
      _
    // Predicated region
    $region22: #{tpu_custom_call.1} parent=1 // pred_check
      _
    $region23: #{tpu_custom_call.1} parent=1 // pred_check_branch
      %60 = sbr.rel (0) target = $region25
    $region24: #{tpu_custom_call.1} parent=1 // pred_region
      %62 = dma.done [#allocation4], 64
    $region25: #{tpu_custom_call.1} parent=1 // pred_fallthru
      _
    %63 = vsyncpa [#allocation3], 1
    %64 = vsyncpa [#allocation6], 1
    %65 = vsyncpa [#allocation4], 1

</llo_original>
